<compile_context>
chip_gen: v7x
topology: tpu7x:2x2x1
jax: 0.10.0
libtpu: 0.0.40
codegen_flags: <defaults>
</compile_context>

<pallas_src>
import jax
import jax.numpy as jnp
from jax.experimental import pallas as pl
from jax.experimental.pallas import tpu as pltpu


def _sublane_pack(itemsize):
    # f32 -> 8, bf16 -> 16, int8/fp8 -> 32 rows per packed vreg sublane group.
    return {4: 8, 2: 16, 1: 32}.get(int(itemsize), 8)


def _attention_kernel(x_ref, wk_ref, pb_ref, o_ref):
    # x_ref : (Bt, T, D)   wk_ref : (D, H)   pb_ref : (2, H)   o_ref : (Bt, D)
    # pb_ref row 0 = b_kernel + bias (folded), row 1 = w_prob.
    Bt, T, D = x_ref.shape

    x = x_ref[...]                                         # (Bt, T, D)
    pb = pb_ref[...].astype(jnp.float32)
    b, wp = pb[0:1, :], pb[1:2, :]                         # (1, H) each

    # attention_state = tanh(x @ Wk + b): one big MXU matmul, f32 accumulation.
    # Merging (Bt, T, D) -> (Bt*T, D) is layout-free when T is a multiple of
    # the sublane pack; otherwise keep the projection 3-D (rows independent
    # either way).
    if T % _sublane_pack(jnp.dtype(x_ref.dtype).itemsize) == 0:
        s = jnp.dot(x.reshape(Bt * T, D), wk_ref[...],
                    preferred_element_type=jnp.float32)    # (Bt*T, H)
        s = jnp.tanh(s + b).reshape(Bt, T, -1)             # (Bt, T, H)
    else:
        s = jax.lax.dot_general(x, wk_ref[...], (((2,), (0,)), ((), ())),
                                preferred_element_type=jnp.float32)
        s = jnp.tanh(s + b)                                 # (Bt, T, H)

    # prob_kernel is an (H -> 1) projection: VPU multiply + lane reduce in f32
    # (an N=1 MXU matmul would waste 127/128 of the array).
    logits = jnp.sum(s * wp, axis=-1)                       # (Bt, T)

    # Row-wise softmax over T.  Keep the exp weights UNnormalized and divide
    # the pooled (Bt, D) vector once (D values instead of T probs).  Exact f32
    # divide — no approx reciprocal.
    m = jnp.max(logits, axis=-1, keepdims=True)             # (Bt, 1)
    e = jnp.exp(logits - m)                                 # (Bt, T)
    denom = jnp.sum(e, axis=-1, keepdims=True)              # (Bt, 1)

    # Weighted pooling: VPU multiply + cross-sublane reduce in f32.  A batched
    # (Bt,1,T)x(Bt,T,D) matmul would serialize Bt tiny MXU pushes.
    pooled = jnp.sum(x.astype(jnp.float32) * e[:, :, None], axis=1)   # (Bt, D)

    o_ref[...] = (pooled / denom).astype(o_ref.dtype)


def _auto_block_b(B, T, D, H, itemsize, budget_bytes=24 * 1024 * 1024):
    """Largest batch tile whose (8,128)-padded VMEM footprint fits the budget."""
    lane = 128
    sub = _sublane_pack(itemsize)
    t_p = -(-T // sub) * sub
    d_p = -(-D // lane) * lane
    h_p = -(-H // lane) * lane
    per_sample = (2 * t_p * d_p * itemsize      # x tile, double-buffered
                  + t_p * h_p * 4               # s = tanh(...) in f32
                  + 2 * t_p * d_p * 4           # f32 pooling temporaries
                  + 2 * d_p * itemsize)         # output row, double-buffered
    blk = max(1, budget_bytes // per_sample)
    if B >= 16:
        # keep at least 2 grid steps so both v7x TensorCores get work
        blk = min(blk, -(-B // 2))
    return blk


def attention_layer(x, w_kernel, b_kernel, bias, w_prob, *, block_b=None,
                    vmem_limit_bytes=48 * 1024 * 1024):
    """Pallas forward of AttentionLayer.

    x:        (B, T, D) or (T, D) (unsqueezed to batch of 1)
    w_kernel: (H, D)   b_kernel: (H,)   bias: (H,)   w_prob: (1, H)
    returns:  (B, D)
    """
    x = jnp.asarray(x)
    if x.ndim == 2:
        x = x[None, ...]
    B, T, D = x.shape
    H = w_kernel.shape[0]
    itemsize = jnp.dtype(x.dtype).itemsize

    # One-time XLA-side prep: W_kernel transposed to MXU-natural (K, N);
    # b_kernel + bias folded with w_prob into a single (2, H) operand
    # (one fewer DMA stream).
    wk_t = jnp.asarray(w_kernel).T                                     # (D, H)
    pb = jnp.concatenate(
        [(jnp.asarray(b_kernel) + jnp.asarray(bias)).reshape(1, H),
         jnp.asarray(w_prob).reshape(1, H)], axis=0)                   # (2, H)

    # Batch tile: largest that fits the layout-aware VMEM budget; never
    # exceeds it (old max(8, ...) clamp bug fixed).
    if block_b is None:
        block_b = _auto_block_b(B, T, D, H, itemsize)
    Bt = max(1, min(int(block_b), B))
    if Bt < B and Bt >= 8:
        Bt = (Bt // 8) * 8      # sublane-aligned partial tiles, still <= block_b
    elif Bt < B:
        # TODO(synk): add a T-axis grid with online-softmax accumulation for
        # samples whose (T, D) slab alone exceeds the VMEM budget.
        Bt = min(B, 8)
    grid_b = pl.cdiv(B, Bt)     # ragged last block masked by Pallas (no jnp.pad)

    return pl.pallas_call(
        _attention_kernel,
        out_shape=jax.ShapeDtypeStruct((B, D), x.dtype),
        grid_spec=pltpu.PrefetchScalarGridSpec(
            num_scalar_prefetch=0,
            grid=(grid_b,),
            in_specs=[
                pl.BlockSpec((Bt, T, D), lambda b: (b, 0, 0)),   # x batch tile
                pl.BlockSpec((D, H), lambda b: (0, 0)),          # W_kernel^T (whole)
                pl.BlockSpec((2, H), lambda b: (0, 0)),          # [b_k+bias ; w_prob]
            ],
            out_specs=pl.BlockSpec((Bt, D), lambda b: (b, 0)),
        ),
        compiler_params=pltpu.CompilerParams(
            dimension_semantics=("parallel",),
            vmem_limit_bytes=vmem_limit_bytes),
    )(x, wk_t, pb)


def attention_layer_ref(x, w_kernel, b_kernel, bias, w_prob):
    """Pure-JAX reference matching the PyTorch forward."""
    if x.ndim == 2:
        x = x[None, ...]
    s = jnp.tanh(jnp.einsum("btd,hd->bth", x, w_kernel) + b_kernel + bias)
    logits = jnp.einsum("bth,oh->bto", s, w_prob)[..., 0]          # (B, T)
    probs = jax.nn.softmax(logits, axis=1)
    return jnp.sum(x * probs[..., None], axis=1)                   # (B, D)


if __name__ == "__main__":
    # Shapes consistent with the module: seq=8, input_dim=32, num_state=16.
    B, T, D, H = 2, 8, 32, 16

    key = jax.random.PRNGKey(0)
    kx, kw, kb, kp = jax.random.split(key, 4)

    x = jax.random.normal(kx, (B, T, D), dtype=jnp.float32)
    w_kernel = jax.random.normal(kw, (H, D), dtype=jnp.float32) * 0.1
    b_kernel = jax.random.normal(kb, (H,), dtype=jnp.float32) * 0.1
    bias = jnp.zeros((H,), dtype=jnp.float32)          # nn.Parameter(torch.zeros)
    w_prob = jax.random.normal(kp, (1, H), dtype=jnp.float32) * 0.1

    # Tolerance note: the kernel introduces no approximation beyond the MXU's
    # default f32 matmul precision on the (D->H) projection (the same applies
    # to the unfused XLA reference); softmax and pooling are exact f32.
    TOL = dict(atol=3e-3, rtol=3e-3)

    # 1) Tiny batch: single grid step, block == full array dims.
    out = jax.block_until_ready(
        attention_layer(x, w_kernel, b_kernel, bias, w_prob))
    ref = attention_layer_ref(x, w_kernel, b_kernel, bias, w_prob)
    assert out.shape == (B, D)
    err = float(jnp.max(jnp.abs(out - ref)))
    assert jnp.allclose(out, ref, **TOL), f"mismatch (small B), max|diff|={err}"

    # 2) Larger, non-divisible batch: exercises batch tiling (Bt=8), the
    #    ragged last block (20 = 8 + 8 + 4) and the parallel grid.
    B2 = 20
    x2 = jax.random.normal(jax.random.PRNGKey(1), (B2, T, D), dtype=jnp.float32)
    out2 = jax.block_until_ready(
        attention_layer(x2, w_kernel, b_kernel, bias, w_prob, block_b=8))
    ref2 = attention_layer_ref(x2, w_kernel, b_kernel, bias, w_prob)
    assert out2.shape == (B2, D)
    err2 = float(jnp.max(jnp.abs(out2 - ref2)))
    assert jnp.allclose(out2, ref2, **TOL), f"mismatch (tiled B), max|diff|={err2}"

    print("KERNEL_OK")
</pallas_src>

<mosaic_0001>
module attributes {stable_mosaic.version = 11 : i64} {
  func.func @_attention_kernel(%arg0: i32, %arg1: memref<2x8x32xf32, #tpu.memory_space<vmem>>, %arg2: memref<32x16xf32, #tpu.memory_space<vmem>>, %arg3: memref<2x16xf32, #tpu.memory_space<vmem>>, %arg4: memref<2x32xf32, #tpu.memory_space<vmem>>) attributes {dimension_semantics = [#tpu.dimension_semantics<parallel>], iteration_bounds = array<i64: 1>, scalar_prefetch = 0 : i64, scratch_operands = 0 : i64, tpu.core_type = #tpu.core_type<tc>, window_params = [{transform_indices = @transform_0, window_bounds = array<i64: 2, 8, 32>}, {pipeline_mode = #tpu.pipeline_mode<synchronous>, transform_indices = @transform_1, window_bounds = array<i64: 32, 16>}, {pipeline_mode = #tpu.pipeline_mode<synchronous>, transform_indices = @transform_2, window_bounds = array<i64: 2, 16>}, {transform_indices = @transform_3, window_bounds = array<i64: 2, 32>}]} {
    %c0 = arith.constant 0 : index
    %c0_0 = arith.constant 0 : index
    %c0_1 = arith.constant 0 : index
    %0 = vector.load %arg1[%c0, %c0_0, %c0_1] : memref<2x8x32xf32, #tpu.memory_space<vmem>>, vector<2x8x32xf32>
    %c0_2 = arith.constant 0 : index
    %c0_3 = arith.constant 0 : index
    %1 = vector.load %arg3[%c0_2, %c0_3] : memref<2x16xf32, #tpu.memory_space<vmem>>, vector<2x16xf32>
    %2 = vector.extract_strided_slice %1 {offsets = [0, 0], sizes = [1, 16], strides = [1, 1]} : vector<2x16xf32> to vector<1x16xf32>
    %3 = vector.extract_strided_slice %1 {offsets = [1, 0], sizes = [1, 16], strides = [1, 1]} : vector<2x16xf32> to vector<1x16xf32>
    %4 = vector.shape_cast %0 : vector<2x8x32xf32> to vector<16x32xf32>
    %c0_4 = arith.constant 0 : index
    %c0_5 = arith.constant 0 : index
    %5 = vector.load %arg2[%c0_4, %c0_5] : memref<32x16xf32, #tpu.memory_space<vmem>>, vector<32x16xf32>
    %cst = arith.constant dense<0.000000e+00> : vector<16x16xf32>
    %6 = tpu.matmul %4, %5, %cst {dimension_numbers = #tpu.dot_dimension_numbers<[1], [0], [0], [1], [0, 0, 1, 1], [], []>} : vector<16x32xf32>, vector<32x16xf32>, vector<16x16xf32> -> vector<16x16xf32>
    %7 = vector.broadcast %2 : vector<1x16xf32> to vector<16x16xf32>
    %8 = arith.addf %6, %7 : vector<16x16xf32>
    %9 = math.tanh %8 : vector<16x16xf32>
    %10 = vector.shape_cast %9 : vector<16x16xf32> to vector<2x8x16xf32>
    %11 = vector.shape_cast %3 : vector<1x16xf32> to vector<1x1x16xf32>
    %12 = vector.broadcast %11 : vector<1x1x16xf32> to vector<2x8x16xf32>
    %13 = arith.mulf %10, %12 : vector<2x8x16xf32>
    %cst_6 = arith.constant dense<0.000000e+00> : vector<2x8xf32>
    %14 = vector.multi_reduction <add>, %13, %cst_6 [2] : vector<2x8x16xf32> to vector<2x8xf32>
    %cst_7 = arith.constant dense<0xFF800000> : vector<2xf32>
    %15 = vector.multi_reduction <maximumf>, %14, %cst_7 [1] : vector<2x8xf32> to vector<2xf32>
    %16 = vector.shape_cast %15 : vector<2xf32> to vector<2x1xf32>
    %17 = vector.broadcast %16 : vector<2x1xf32> to vector<2x8xf32>
    %18 = arith.subf %14, %17 : vector<2x8xf32>
    %19 = math.exp %18 : vector<2x8xf32>
    %cst_8 = arith.constant dense<0.000000e+00> : vector<2xf32>
    %20 = vector.multi_reduction <add>, %19, %cst_8 [1] : vector<2x8xf32> to vector<2xf32>
    %21 = vector.shape_cast %20 : vector<2xf32> to vector<2x1xf32>
    %22 = vector.shape_cast %19 : vector<2x8xf32> to vector<2x8x1xf32>
    %23 = vector.broadcast %22 : vector<2x8x1xf32> to vector<2x8x32xf32>
    %24 = arith.mulf %0, %23 : vector<2x8x32xf32>
    %cst_9 = arith.constant dense<0.000000e+00> : vector<2x32xf32>
    %25 = vector.multi_reduction <add>, %24, %cst_9 [1] : vector<2x8x32xf32> to vector<2x32xf32>
    %26 = vector.broadcast %21 : vector<2x1xf32> to vector<2x32xf32>
    %27 = arith.divf %25, %26 : vector<2x32xf32>
    %c0_10 = arith.constant 0 : index
    %c0_11 = arith.constant 0 : index
    %28 = vector.load %arg4[%c0_10, %c0_11] : memref<2x32xf32, #tpu.memory_space<vmem>>, vector<2x32xf32>
    tpu.vector_store %arg4[%c0_10, %c0_11], %27 {strides = array<i32>} : memref<2x32xf32, #tpu.memory_space<vmem>>, vector<2x32xf32>,
    return
  }
  func.func @transform_0(%arg0: i32) -> (i32, i32, i32) {
    %c0_i32 = arith.constant 0 : i32
    %c0_i32_0 = arith.constant 0 : i32
    %c0_i32_1 = arith.constant 0 : i32
    return %arg0, %c0_i32, %c0_i32_0 : i32, i32, i32
  }
  func.func @transform_1(%arg0: i32) -> (i32, i32) {
    %c0_i32 = arith.constant 0 : i32
    %c0_i32_0 = arith.constant 0 : i32
    %c0_i32_1 = arith.constant 0 : i32
    return %c0_i32, %c0_i32_0 : i32, i32
  }
  func.func @transform_2(%arg0: i32) -> (i32, i32) {
    %c0_i32 = arith.constant 0 : i32
    %c0_i32_0 = arith.constant 0 : i32
    %c0_i32_1 = arith.constant 0 : i32
    return %c0_i32, %c0_i32_0 : i32, i32
  }
  func.func @transform_3(%arg0: i32) -> (i32, i32) {
    %c0_i32 = arith.constant 0 : i32
    %c0_i32_0 = arith.constant 0 : i32
    return %arg0, %c0_i32 : i32, i32
  }
}

</mosaic_0001>

<llo_original>
// kernel: tpu_custom_call.1
$region0: #{tpu_custom_call.1}
  #allocation0 [shape = 'u32[]', space=smem, size = 0x4, offset = 0x4, fixed_abs, tag = 'smem constant byte address 0x4 - core index']
  #allocation1 [shape = 'u32[144,128]{1,0:T(1,128)}', space=vmem, size = 0x12000, scoped, tag = 'internal scratch']
  %s0 = inlined_call_operand.vmem [shape: f32[2,8,32], index: 0, kind: input, shape index: {}]
  %s1 = inlined_call_operand.vmem [shape: f32[32,16], index: 1, kind: input, shape index: {}]
  %s2 = inlined_call_operand.vmem [shape: f32[2,16], index: 2, kind: input, shape index: {}]
  %s3 = inlined_call_operand.hbm [shape: f32[2,32], index: 3, kind: output, shape index: {}]
  %s4 = sld [smem:[#allocation0]]
  $region22: #{tpu_custom_call.1} parent=0
    _
  %s6 = ssub.s32 1, %s4
  %s7 = scalar_select 0, %s6, %s4
  $region1: #{tpu_custom_call.1} parent=0
    #allocation2 [shape = 'u8[1024]{0}', space=vmem, size = 0x400, scoped, tag = 'output window, operand 0, single buffered']
    #allocation3 [shape = 's32[1]{0}', space=sflag, size = 0x4, scoped, tag = 'scoped memory for tpu_custom_call.1']
    %8 = vsyncpa [#allocation3], 0
    // Predicated region
    $region2: #{tpu_custom_call.1} parent=1 // pred_check
      _
    $region3: #{tpu_custom_call.1} parent=1 // pred_check_branch
      %10 = sbr.rel (0) target = $region5
    $region4: #{tpu_custom_call.1} parent=1 // pred_region
      _
    $region5: #{tpu_custom_call.1} parent=1 // pred_fallthru
      _
    // Predicated region
    $region6: #{tpu_custom_call.1} parent=1 // pred_check
      _
    $region7: #{tpu_custom_call.1} parent=1 // pred_check_branch
      %12 = sbr.rel (0) target = $region9
    $region8: #{tpu_custom_call.1} parent=1 // pred_region
      _
    $region9: #{tpu_custom_call.1} parent=1 // pred_fallthru
      _
    // Predicated region
    $region10: #{tpu_custom_call.1} parent=1 // pred_check
      _
    $region11: #{tpu_custom_call.1} parent=1 // pred_check_branch
      %14 = sbr.rel (0) target = $region13
    $region12: #{tpu_custom_call.1} parent=1 // pred_region
      _
    $region13: #{tpu_custom_call.1} parent=1 // pred_fallthru
      _
    %v15 = vld [vmem:[%s0] sm:$0xff]
    %v16 = vld [vmem:[%s0 + $0x8] sm:$0xff]
    %v17 = vld [vmem:[%s2] sm:$0x3]
    %v18 = vld [vmem:[%s1] sm:$0xff]
    %v19 = vld [vmem:[%s1 + $0x8] sm:$0xff]
    %v20 = vld [vmem:[%s1 + $0x10] sm:$0xff]
    %v21 = vld [vmem:[%s1 + $0x18] sm:$0xff]
    %v22 = vlaneseq
    %v23 = vshrl.u32 %v22, 7
    %v24 = vsub.s32 0, %v23
    %v25 = vrot.slane %v17, %v24
    %vm26 = vcmask 261120
    %v28 = vsel %vm26, %v15, 0
    %v31 = vsel %vm26, %v16, 0
    %33 = vmatprep.subr.mxu0 0.0
    %34 = vmatpush1.msra.mxu0 %v18
    %35 = vmatprep.subr.mxu0 0.0
    %36 = vmatpush1.msra.mxu0 %v19
    %37 = vmatprep.subr.mxu0 0.0
    %38 = vmatpush1.msra.mxu0 %v20
    %39 = vmatprep.subr.mxu0 0.0
    %40 = vmatpush1.msra.mxu0 %v21
    %41 = vmatprep.subr.mxu0 0.0
    %42 = vmatpush1.msra.mxu0 0.0
    %43 = vmatprep.subr.mxu0 0.0
    %44 = vmatpush1.msra.mxu0 0.0
    %45 = vmatprep.subr.mxu0 0.0
    %46 = vmatpush1.msra.mxu0 0.0
    %47 = vmatprep.subr.mxu0 0.0
    %48 = vmatpush1.msra.mxu0 0.0
    %49 = vmatprep.subr.mxu0 0.0
    %50 = vmatpush1.msra.mxu0 0.0
    %51 = vmatprep.subr.mxu0 0.0
    %52 = vmatpush1.msra.mxu0 0.0
    %53 = vmatprep.subr.mxu0 0.0
    %54 = vmatpush1.msra.mxu0 0.0
    %55 = vmatprep.subr.mxu0 0.0
    %56 = vmatpush1.msra.mxu0 0.0
    %57 = vmatprep.subr.mxu0 0.0
    %58 = vmatpush1.msra.mxu0 0.0
    %59 = vmatprep.subr.mxu0 0.0
    %60 = vmatpush1.msra.mxu0 0.0
    %61 = vmatprep.subr.mxu0 0.0
    %62 = vmatpush1.msra.mxu0 0.0
    %63 = vmatprep.subr.mxu0 0.0
    %64 = vmatpush1.msra.mxu0 0.0
    %65 = vmatprep.subr.mxu0 0.0
    %66 = vmatpush1.msra.mxu0 0.0
    %67 = vmatprep.subr.mxu0 0.0
    %68 = vmatpush1.msra.mxu0 0.0
    %69 = vmatprep.subr.mxu0 0.0
    %70 = vmatpush1.msra.mxu0 0.0
    %71 = vmatprep.subr.mxu0 0.0
    %72 = vmatpush1.msra.mxu0 0.0
    %73 = vmatprep.subr.mxu0 0.0
    %74 = vmatpush1.msra.mxu0 0.0
    %75 = vmatprep.subr.mxu0 0.0
    %76 = vmatpush1.msra.mxu0 0.0
    %77 = vmatprep.subr.mxu0 0.0
    %78 = vmatpush1.msra.mxu0 0.0
    %79 = vmatprep.subr.mxu0 0.0
    %80 = vmatpush1.msra.mxu0 0.0
    %81 = vmatprep.subr.mxu0 0.0
    %82 = vmatpush1.msra.mxu0 0.0
    %83 = vmatprep.subr.mxu0 0.0
    %84 = vmatpush1.msra.mxu0 0.0
    %85 = vmatprep.subr.mxu0 0.0
    %86 = vmatpush1.msra.mxu0 0.0
    %87 = vmatprep.subr.mxu0 0.0
    %88 = vmatpush1.msra.mxu0 0.0
    %89 = vmatprep.subr.mxu0 0.0
    %90 = vmatpush1.msra.mxu0 0.0
    %91 = vmatprep.subr.mxu0 0.0
    %92 = vmatpush1.msra.mxu0 0.0
    %93 = vmatprep.subr.mxu0 0.0
    %94 = vmatpush1.msra.mxu0 0.0
    %95 = vmatprep.subr.mxu0 0.0
    %96 = vmatpush1.msra.mxu0 0.0
    %97 = vmatprep.mubr.f32.mxu0 0.0
    %98 = vmatmul.mubr.f32.gmra.mrb[0].mxu0 %v28
    %v99 = vpop.f32.mrb[0].mxu0
    %v100 = vadd.f32 %v25, %v99
    %v101 = vpop.f32.mrb[0].mxu0
    %102 = vmatprep.mubr.f32.mxu0 0.0
    %103 = vmatmul.mubr.f32.gmra.mrb[0].mxu0 %v31
    %v104 = vpop.f32.mrb[0].mxu0
    %v105 = vadd.f32 %v25, %v104
    %v106 = vpop.f32.mrb[0].mxu0
    %107 = vdwg.mxu0
    %v108 = vtanh.pop %v100
    %v109 = vtanh.pop %v105
    %v110 = vlaneseq
    %v111 = vshrl.u32 %v110, 7
    %v112 = vsub.s32 1, %v111
    %v113 = vrot.slane %v17, %v112
    %v114 = vmul.f32 %v108, %v113
    %v115 = vmul.f32 %v109, %v113
    %vm116 = vcmask 130048
    %v117 = vsel %vm116, %v114, 0.0
    %118 = vadd.xlane.f32.xlu0 %v117
    %v119 = vpop.xlane.xlu0 %118
    %v120 = vsel %vm116, %v115, 0.0
    %121 = vadd.xlane.f32.xlu0 %v120
    %v122 = vpop.xlane.xlu0 %121
    %v125 = vlaneseq
    %v126 = vand.u32 %v125, 127
    %v127 = vlaneseq
    %v128 = vshrl.u32 %v127, 7
    %v129 = vsub.s32 %v126, %v128
    %v130 = vrot.slane %v119, %v129
    %v131 = vlaneseq
    %v132 = vshrl.u32 %v131, 7
    %v133 = vsub.s32 %v126, %v132
    %v134 = vrot.slane %v122, %v133
    %vm135 = vcmask 1041409
    %v136 = vsel %vm135, %v134, %v130
    %vm138 = vcmask 58368
    %v139 = vsel %vm138, %v136, -inf
    %140 = vmax.xlane.f32.xlu0 %v139
    %v141 = vpop.xlane.xlu0 %140
    %v143 = vlaneseq
    %v144 = vshrl.u32 %v143, 7
    %v145 = vsub.s32 0, %v144
    %v146 = vrot.slane %v141, %v145
    %v147 = vlaneseq
    %v148 = vshrl.u32 %v147, 7
    %v149 = vsub.s32 1, %v148
    %v150 = vrot.slane %v141, %v149
    %v153 = vsub.f32 %v119, %v146
    %v154 = vsub.f32 %v122, %v150
    %v155 = vmul.f32 %v153, 1.442695
    %v156 = vpow.pop %v155
    %v157 = vmul.f32 %v154, 1.442695
    %v158 = vpow.pop %v157
    %161 = vset.pattern.permute.xlu0 0
    %162 = vperm.xlu0 %161, %v156
    %v163 = vpop.permute.xlu0 %162
    %164 = vset.pattern.permute.xlu0 0
    %165 = vperm.xlu0 %164, %v158
    %v166 = vpop.permute.xlu0 %165
    %v167 = vlaneseq
    %v168 = vshrl.u32 %v167, 7
    %v169 = vsub.s32 %v126, %v168
    %v170 = vrot.slane %v163, %v169
    %v171 = vlaneseq
    %v172 = vshrl.u32 %v171, 7
    %v173 = vsub.s32 %v126, %v172
    %v174 = vrot.slane %v166, %v173
    %v175 = vsel %vm135, %v174, %v170
    %v177 = vsel %vm138, %v175, 0.0
    %178 = vadd.xlane.f32.xlu0 %v177
    %v179 = vpop.xlane.xlu0 %178
    %v182 = vmul.f32 %v15, %v163
    %v183 = vmul.f32 %v16, %v166
    %v184 = vsel %vm26, %v182, 0.0
    %v185 = vrot.slane %v184, 4
    %v186 = vadd.f32 %v184, %v185
    %v187 = vrot.slane %v186, 2
    %v188 = vadd.f32 %v186, %v187
    %v189 = vrot.slane %v188, 1
    %v190 = vadd.f32 %v188, %v189
    %v191 = vsel %vm26, %v183, 0.0
    %v192 = vrot.slane %v191, 4
    %v193 = vadd.f32 %v191, %v192
    %v194 = vrot.slane %v193, 2
    %v195 = vadd.f32 %v193, %v194
    %v196 = vrot.slane %v195, 1
    %v197 = vadd.f32 %v195, %v196
    %v199 = vrot.slane %v179, 1
    %v202 = vrcp.pop %v179
    %v203 = vmul.f32 %v190, %v202
    %v204 = vrcp.pop %v199
    %v205 = vmul.f32 %v197, %v204
    %v208 = vrot.slane %v205, 7
    %v209 = vsel %vm135, %v208, %v203
    %vm211 = vcmask 254976
    %212 = vst.msk [vmem:[#allocation2] sm:$0x3] %vm211, %v209
    // Predicated region
    $region14: #{tpu_custom_call.1} parent=1 // pred_check
      _
    $region15: #{tpu_custom_call.1} parent=1 // pred_check_branch
      %214 = sbr.rel (0) target = $region17
    $region16: #{tpu_custom_call.1} parent=1 // pred_region
      %s216 = ssub.s32 32, 32
      %217 = vsyncadd [#allocation3], %s216
      %s219 = sshll.u32 [#allocation2], 4
      %s220 = int_to_ptr.vmem [resolvable:$true] %s219
      %222 = dma.vmem_to_hbm [thread:$0]  %s220, 32, %s3, [#allocation3]
    $region17: #{tpu_custom_call.1} parent=1 // pred_fallthru
      _
    // Predicated region
    $region18: #{tpu_custom_call.1} parent=1 // pred_check
      _
    $region19: #{tpu_custom_call.1} parent=1 // pred_check_branch
      %224 = sbr.rel (0) target = $region21
    $region20: #{tpu_custom_call.1} parent=1 // pred_region
      %225 = dma.done [#allocation3], 32
    $region21: #{tpu_custom_call.1} parent=1 // pred_fallthru
      _
    %226 = vsyncpa [#allocation3], 1

</llo_original>
